<compile_context>
chip_gen: v6e
topology: v6e:2x2x1
jax: 0.10.0
libtpu: 0.0.40
codegen_flags: <defaults>
</compile_context>

<pallas_src>
import functools
import math

import jax
import jax.numpy as jnp
import numpy as np
from jax import lax
from jax.experimental import pallas as pl
from jax.experimental.pallas import tpu as pltpu


_STAGE_WIRING = [
    # (name, top, bot, mid) exactly as in repeat_block.forward
    ("L1", "f1", "E1", "f1"),
    ("L2", "E1", "E2", "f2"),
    ("L3", "E2", "E3", "f3"),
    ("L4", "E3", "f4", "f4"),
    ("M1", "L1", "L2", "E1"),
    ("M2", "L2", "L3", "E2"),
    ("M3", "L3", "L4", "E3"),
    ("F1", "L1", "M1", "L1"),
    ("F2", "M1", "M2", "L2"),
    ("F3", "M2", "M3", "L3"),
    ("F4", "M3", "L4", "L4"),
]
_STAGE_NAMES = [s[0] for s in _STAGE_WIRING]
_FEATURE_NAMES = ["f1", "E1", "f2", "E2", "f3", "E3", "f4"]
_OUTPUT_NAMES = ["F1", "M1", "F2", "M2", "F3", "M3", "F4"]


# ----------------------------------------------------------------------------
# Host-side (trace-time) constants: resize matrices and tap boundary masks
# ----------------------------------------------------------------------------
def _adaptive_pool_matrix(src, dst):
    """(dst, src) row-stochastic matrix == F.adaptive_avg_pool along one dim."""
    A = np.zeros((dst, src), np.float32)
    for i in range(dst):
        lo = (i * src) // dst
        hi = -((-(i + 1) * src) // dst)          # ceil((i+1)*src/dst)
        A[i, lo:hi] = 1.0 / (hi - lo)
    return A


def _bilinear_matrix(src, dst):
    """(dst, src) bilinear-interp matrix (align_corners=False, half-pixel)."""
    A = np.zeros((dst, src), np.float32)
    if src == 1:
        A[:, 0] = 1.0
        return A
    scale = src / dst
    for i in range(dst):
        x = min(max((i + 0.5) * scale - 0.5, 0.0), src - 1.0)
        p0 = int(math.floor(x))
        p1 = min(p0 + 1, src - 1)
        f = x - p0
        A[i, p0] += 1.0 - f
        A[i, p1] += f
    return A


def _resize_matrix_flat(sh, sw, dh, dw, kind):
    """(sh*sw, dh*dw) matrix R with  resized = src(C, sh*sw) @ R  (one image)."""
    make = _adaptive_pool_matrix if kind == "pool" else _bilinear_matrix
    ah, aw = make(sh, dh), make(sw, dw)
    return np.einsum("ip,jq->pqij", ah, aw).reshape(sh * sw, dh * dw)


def _tap_mask_slab(B, H, W):
    """(9, B*H*W) 0/1 mask: tap k=(dh+1)*3+(dw+1) is valid at lane (b, h, w)
    iff (h+dh, w+dw) lies inside the same image (no cross-image/row bleed)."""
    hs, ws = np.arange(H), np.arange(W)
    slab = np.zeros((9, B, H, W), np.float32)
    k = 0
    for dh in (-1, 0, 1):
        for dw in (-1, 0, 1):
            hv = ((hs + dh >= 0) & (hs + dh < H)).astype(np.float32)
            wv = ((ws + dw >= 0) & (ws + dw < W)).astype(np.float32)
            slab[k] = (hv[:, None] * wv[None, :])[None]
            k += 1
    return slab.reshape(9, B * H * W)


@functools.lru_cache(maxsize=None)
def _pltpu_roll_matches_jnp():
    """One-time probe of pltpu.roll's rotation direction vs jnp.roll (guards
    the tap-shift sign against convention drift across jax versions)."""
    x = jnp.arange(8 * 128, dtype=jnp.float32).reshape(8, 128)

    def _k(x_ref, o_ref):
        o_ref[...] = pltpu.roll(x_ref[...], 3, axis=1)

    y = pl.pallas_call(_k, out_shape=jax.ShapeDtypeStruct((8, 128), jnp.float32))(x)
    if bool(jnp.array_equal(y, jnp.roll(x, 3, axis=1))):
        return True
    if bool(jnp.array_equal(y, jnp.roll(x, -3, axis=1))):
        return False
    raise RuntimeError("unexpected pltpu.roll semantics")


# ----------------------------------------------------------------------------
# The single fused kernel: all 11 stages, batch folded onto the lane axis
# ----------------------------------------------------------------------------
def _repeat_block_kernel(*refs, meta):
    nf = len(meta["features"])
    nr = meta["n_resize"]
    nm = meta["n_masks"]
    feat_refs = refs[:nf]
    res_refs = refs[nf:nf + nr]
    mask_refs = refs[nf + nr:nf + nr + nm]
    wf_ref, bias_ref, w2_ref = refs[nf + nr + nm:nf + nr + nm + 3]
    out_refs = refs[nf + nr + nm + 3:]

    f32, bf16 = jnp.float32, jnp.bfloat16
    roll_like_jnp = meta["roll_like_jnp"]

    def shift_lanes(x, s, length):
        # want out[:, i] = x[:, i + s]   (out-of-range lanes masked afterwards)
        r = (-s) % length if roll_like_jnp else s % length
        return pltpu.roll(x, r, axis=1)                 # XLU lane rotate

    # All activations live as (C, B*H*W) f32 values; intermediates never
    # leave the chip between stages.
    vals = {name: ref[...] for name, ref in zip(meta["features"], feat_refs)}
    mask_vals = [m_ref[...] for m_ref in mask_refs]     # each (9, L) f32

    for si, st in enumerate(meta["stages"]):
        # ---- Attention_Module: resize top/bot to mid's size, then fuse -----
        top, bot, mid = vals[st["top"]], vals[st["bot"]], vals[st["mid"]]
        if st["rtop"] is not None:                      # adaptive avg pool
            top = jnp.dot(top.astype(bf16), res_refs[st["rtop"]][...],
                          preferred_element_type=f32)
        if st["rbot"] is not None:                      # bilinear upsample
            bot = jnp.dot(bot.astype(bf16), res_refs[st["rbot"]][...],
                          preferred_element_type=f32)
        # TODO(synk): Attention_Module's `attn` submodule is not defined in the
        # source file; an elementwise fusion (top + bot + mid) is used here.
        x = top + bot + mid                             # (C, L) f32

        # ---- Conv_block: 3x3 depthwise folded into the first 1x1 conv ------
        W, L = st["W"], st["L"]
        mask = mask_vals[st["mask"]]
        use_roll = (L % 128 == 0)                       # lane-tile aligned
        if not use_roll:                                # tiny 4x4 / 2x2 stages
            pad = W + 1
            zpad = jnp.zeros((x.shape[0], pad), f32)
            xp = jnp.concatenate([zpad, x, zpad], axis=1)
        taps = []
        k = 0
        for dh in (-1, 0, 1):
            for dw in (-1, 0, 1):
                s = dh * W + dw
                if s == 0:
                    t = x
                elif use_roll:
                    t = shift_lanes(x, s, L)
                else:
                    t = xp[:, pad + s:pad + s + L]
                if (dh, dw) != (0, 0):                  # zero invalid lanes
                    t = t * mask[k:k + 1, :]
                taps.append(t.astype(bf16))
                k += 1
        im2col = jnp.concatenate(taps, axis=0)          # (9C, L) bf16

        # depthwise (x) 1x1 conv (x) folded BN-scale as ONE MXU matmul, K=9*C
        y = jnp.dot(wf_ref[si], im2col, preferred_element_type=f32)
        y = jnp.maximum(y + bias_ref[si], 0.0)          # folded BN bias + ReLU
        # final 1x1 conv
        vals[st["name"]] = jnp.dot(w2_ref[si], y.astype(bf16),
                                   preferred_element_type=f32)

    for out_ref, name in zip(out_refs, meta["outputs"]):
        out_ref[...] = vals[name].astype(out_ref.dtype)


# ----------------------------------------------------------------------------
# Wrapper: ONE pallas_call for the whole repeat_block
# ----------------------------------------------------------------------------
def _full_spec(shape):
    shape = tuple(int(d) for d in shape)
    nd = len(shape)
    return pl.BlockSpec(shape, lambda i, _nd=nd: (0,) * _nd)


def repeat_block_forward(features, packed):
    """repeat_block forward pass as one fused pallas_call (all 11 stages)."""
    B, C = int(features[0].shape[0]), int(features[0].shape[1])
    hw = {n: (int(f.shape[2]), int(f.shape[3]))
          for n, f in zip(_FEATURE_NAMES, features)}
    for name, _top, _bot, mid in _STAGE_WIRING:
        hw[name] = hw[mid]

    resize_keys, resize_mats = [], []

    def _resize_idx(kind, src, dst):
        if src == dst:
            return None
        key = (kind, src, dst)
        if key not in resize_keys:
            r = _resize_matrix_flat(src[0], src[1], dst[0], dst[1], kind)
            rb = np.kron(np.eye(B, dtype=np.float32), r)  # batch block-diagonal
            resize_keys.append(key)
            resize_mats.append(jnp.asarray(rb, jnp.bfloat16))
        return resize_keys.index(key)

    mask_keys, mask_slabs = [], []

    def _mask_idx(hw_mid):
        if hw_mid not in mask_keys:
            mask_keys.append(hw_mid)
            mask_slabs.append(jnp.asarray(_tap_mask_slab(B, *hw_mid), jnp.float32))
        return mask_keys.index(hw_mid)

    stages = []
    for name, top, bot, mid in _STAGE_WIRING:
        H, W = hw[mid]
        stages.append(dict(
            name=name, top=top, bot=bot, mid=mid, W=W, L=B * H * W,
            rtop=_resize_idx("pool", hw[top], hw[mid]),
            rbot=_resize_idx("bilinear", hw[bot], hw[mid]),
            mask=_mask_idx(hw[mid]),
        ))
    meta = dict(features=tuple(_FEATURE_NAMES), outputs=tuple(_OUTPUT_NAMES),
                stages=tuple(stages), n_resize=len(resize_mats),
                n_masks=len(mask_slabs),
                roll_like_jnp=_pltpu_roll_matches_jnp())

    def to_lanes(x):   # (B, C, H, W) -> (C, B*H*W): batch folded onto lanes
        b, c, h, w = x.shape
        return jnp.transpose(x, (1, 0, 2, 3)).reshape(c, b * h * w)

    inputs = [to_lanes(f) for f in features]
    inputs += resize_mats
    inputs += mask_slabs
    inputs += [packed["wf"], packed["bias"], packed["w2"]]
    in_specs = [_full_spec(a.shape) for a in inputs]

    out_shape = tuple(
        jax.ShapeDtypeStruct((C, B * hw[n][0] * hw[n][1]), features[0].dtype)
        for n in _OUTPUT_NAMES)
    out_specs = tuple(_full_spec(s.shape) for s in out_shape)

    outs = pl.pallas_call(
        functools.partial(_repeat_block_kernel, meta=meta),
        out_shape=out_shape,
        grid_spec=pltpu.PrefetchScalarGridSpec(
            num_scalar_prefetch=0,
            grid=(1,),                     # whole block in a single invocation
            in_specs=in_specs,
            out_specs=out_specs,
        ),
        compiler_params=pltpu.CompilerParams(
            dimension_semantics=("arbitrary",)),
    )(*inputs)

    results = []
    for name, o in zip(_OUTPUT_NAMES, outs):
        H, W = hw[name]
        results.append(jnp.transpose(o.reshape(C, B, H, W), (1, 0, 2, 3)))
    return tuple(results)


# ----------------------------------------------------------------------------
# Parameter folding / init (mirrors Conv_block.__init__ shapes)
# ----------------------------------------------------------------------------
def fold_conv_block_params(dw, w1, gamma, beta, mean, var, w2, eps=1e-5):
    """Fold (depthwise 3x3 -> 1x1 -> BN) for inference.

    dw: (9, C) per-channel 3x3 taps with k = kh*3 + kw.
    w1/w2: (C_out, C_in) 1x1 conv weights (PyTorch layout).
    Returns wf (C, 9C) with the BN scale folded in, bias (C, 1), w2 (C, C).
    """
    C = w1.shape[0]
    scale = gamma / jnp.sqrt(var + eps)                 # general BN fold
    bias = beta - mean * scale
    # wf[o, k*C + c] = scale[o] * w1[o, c] * dw[k, c]
    wf = jnp.einsum("o,oc,kc->okc", scale, w1, dw).reshape(C, 9 * C)
    return wf, bias.reshape(C, 1), w2


def init_repeat_block_params(key, C):
    """Deterministic init; returns (packed-for-kernel, raw-for-reference)."""
    wfs, biases, w2s, raw = [], [], [], {}
    for name, k in zip(_STAGE_NAMES, jax.random.split(key, len(_STAGE_NAMES))):
        k1, k2, k3 = jax.random.split(k, 3)
        # dwconv: Conv2d(C, C, 3, groups=C, bias=False)
        dw = jax.random.normal(k1, (9, C), jnp.float32) * math.sqrt(2.0 / 9.0)
        # smooth_layer.conv: Conv2d(C, C, 1, bias=False), N(0, sqrt(2/C)) init
        w1 = jax.random.normal(k2, (C, C), jnp.float32) * math.sqrt(2.0 / C)
        # final conv: Conv2d(C, C, 1, bias=False)
        w2 = jax.random.normal(k3, (C, C), jnp.float32) * math.sqrt(2.0 / C)
        # BatchNorm2d at init: gamma=1, beta=0, running_mean=0, running_var=1
        gamma = jnp.ones((C,), jnp.float32)
        beta = jnp.zeros((C,), jnp.float32)
        mean = jnp.zeros((C,), jnp.float32)
        var = jnp.ones((C,), jnp.float32)
        raw[name] = dict(dw=dw, w1=w1, w2=w2, gamma=gamma, beta=beta,
                         mean=mean, var=var)
        wf, bias, w2f = fold_conv_block_params(dw, w1, gamma, beta, mean, var, w2)
        wfs.append(wf)
        biases.append(bias)
        w2s.append(w2f)
    packed = dict(wf=jnp.stack(wfs).astype(jnp.bfloat16),      # (11, C, 9C)
                  bias=jnp.stack(biases).astype(jnp.float32),  # (11, C, 1)
                  w2=jnp.stack(w2s).astype(jnp.bfloat16))      # (11, C, C)
    return packed, raw


# ----------------------------------------------------------------------------
# Plain-JAX reference (unfolded weights, f32 HIGHEST) for the cross-check
# ----------------------------------------------------------------------------
def _attn_conv_block_ref(top, bot, mid, raw):
    B, C, mH, mW = mid.shape
    hp = lax.Precision.HIGHEST

    def resize(x, kind):
        sH, sW = x.shape[2:]
        if (sH, sW) == (mH, mW):
            return x
        make = _adaptive_pool_matrix if kind == "pool" else _bilinear_matrix
        ah = jnp.asarray(make(sH, mH))
        aw = jnp.asarray(make(sW, mW))
        return jnp.einsum("ip,jq,bcpq->bcij", ah, aw, x, precision=hp)

    x = resize(top, "pool") + resize(bot, "bilinear") + mid
    xp = jnp.pad(x, ((0, 0), (0, 0), (1, 1), (1, 1)))
    dwc = jnp.zeros_like(x)
    for kh in range(3):
        for kw in range(3):
            w = raw["dw"][kh * 3 + kw][None, :, None, None]
            dwc = dwc + xp[:, :, kh:kh + mH, kw:kw + mW] * w
    y = jnp.einsum("oc,bchw->bohw", raw["w1"], dwc, precision=hp)
    scale = raw["gamma"] / jnp.sqrt(raw["var"] + 1e-5)
    bias = raw["beta"] - raw["mean"] * scale
    y = jnp.maximum(y * scale[None, :, None, None] + bias[None, :, None, None], 0.0)
    return jnp.einsum("oc,bchw->bohw", raw["w2"], y, precision=hp)


def repeat_block_forward_ref(features, raw):
    vals = dict(zip(_FEATURE_NAMES, features))
    for name, top, bot, mid in _STAGE_WIRING:
        vals[name] = _attn_conv_block_ref(vals[top], vals[bot], vals[mid],
                                          raw[name])
    return tuple(vals[n] for n in _OUTPUT_NAMES)


if __name__ == "__main__":
    key = jax.random.PRNGKey(0)
    B, C = 2, 32
    kf, kp = jax.random.split(key)
    fk = jax.random.split(kf, 7)

    # FPN-style feature pyramid (NCHW): f1 > f2 > f3 > f4, E_i matches f_{i+1}
    f1 = jax.random.normal(fk[0], (B, C, 16, 16), jnp.float32)
    E1 = jax.random.normal(fk[1], (B, C, 8, 8), jnp.float32)
    f2 = jax.random.normal(fk[2], (B, C, 8, 8), jnp.float32)
    E2 = jax.random.normal(fk[3], (B, C, 4, 4), jnp.float32)
    f3 = jax.random.normal(fk[4], (B, C, 4, 4), jnp.float32)
    E3 = jax.random.normal(fk[5], (B, C, 2, 2), jnp.float32)
    f4 = jax.random.normal(fk[6], (B, C, 2, 2), jnp.float32)
    features = (f1, E1, f2, E2, f3, E3, f4)

    packed, raw = init_repeat_block_params(kp, C)

    _pltpu_roll_matches_jnp()       # warm the one-time roll-direction probe

    fwd = jax.jit(repeat_block_forward)
    outs = fwd(features, packed)
    jax.block_until_ready(outs)

    expected_shapes = [(B, C, 16, 16), (B, C, 8, 8), (B, C, 8, 8), (B, C, 4, 4),
                       (B, C, 4, 4), (B, C, 2, 2), (B, C, 2, 2)]
    assert tuple(o.shape for o in outs) == tuple(expected_shapes)

    refs = jax.jit(repeat_block_forward_ref)(features, raw)
    jax.block_until_ready(refs)
    for name, o, r in zip(_OUTPUT_NAMES, outs, refs):
        o, r = np.asarray(o), np.asarray(r)
        # bf16 MXU operands (f32 accumulation) vs the f32-HIGHEST reference
        # across a depth-3 stage chain: scale-aware elementwise bound plus a
        # tight relative-Frobenius-norm check.
        atol = 0.15 * float(np.std(r)) + 1e-3
        np.testing.assert_allclose(o, r, rtol=5e-2, atol=atol, err_msg=name)
        rel = float(np.linalg.norm(o - r) / (np.linalg.norm(r) + 1e-12))
        assert rel < 4e-2, (name, rel)
    print("KERNEL_OK")
</pallas_src>

<mosaic_0001>
module attributes {stable_mosaic.version = 11 : i64} {
  func.func @_k(%arg0: memref<8x128xf32, #tpu.memory_space<vmem>>, %arg1: memref<8x128xf32, #tpu.memory_space<vmem>>) attributes {dimension_semantics = [], scalar_prefetch = 0 : i64, scratch_operands = 0 : i64, tpu.core_type = #tpu.core_type<tc>} {
    %c0 = arith.constant 0 : index
    %c0_0 = arith.constant 0 : index
    %0 = vector.load %arg0[%c0, %c0_0] : memref<8x128xf32, #tpu.memory_space<vmem>>, vector<8x128xf32>
    %c3_i32 = arith.constant 3 : i32
    %1 = tpu.dynamic_rotate %0 by %c3_i32 dim 1 : vector<8x128xf32>, i32 -> vector<8x128xf32>
    %c0_1 = arith.constant 0 : index
    %c0_2 = arith.constant 0 : index
    %2 = vector.load %arg1[%c0_1, %c0_2] : memref<8x128xf32, #tpu.memory_space<vmem>>, vector<8x128xf32>
    tpu.vector_store %arg1[%c0_1, %c0_2], %1 {strides = array<i32>} : memref<8x128xf32, #tpu.memory_space<vmem>>, vector<8x128xf32>,
    return
  }
}

</mosaic_0001>

<llo_original>
// kernel: tpu_custom_call.1
$region0: #{tpu_custom_call.1}
  #allocation0 [shape = 'u32[]', space=smem, size = 0x4, offset = 0x4, fixed_abs, tag = 'smem constant byte address 0x4 - core index']
  #allocation1 [shape = 'u32[144,128]{1,0:T(1,128)}', space=vmem, size = 0x12000, scoped, tag = 'internal scratch']
  %s0 = inlined_call_operand.hbm [shape: f32[8,128], index: 0, kind: input, shape index: {}]
  %s1 = inlined_call_operand.hbm [shape: f32[8,128], index: 1, kind: output, shape index: {}]
  %s2 = sld [smem:[#allocation0]]
  $region18: #{tpu_custom_call.1} parent=0
    _
  %s4 = ssub.s32 1, %s2
  %s5 = scalar_select 0, %s4, %s2
  $region1: #{tpu_custom_call.1} parent=0
    #allocation2 [shape = 'u8[4096]{0}', space=vmem, size = 0x1000, scoped, tag = 'input window, operand 0, single buffered']
    #allocation3 [shape = 's32[1]{0}', space=sflag, size = 0x4, scoped, tag = 'scoped memory for tpu_custom_call.1']
    #allocation4 [shape = 's32[1]{0}', space=sflag, size = 0x4, scoped, tag = 'scoped memory for tpu_custom_call.1']
    #allocation5 [shape = 'u8[4096]{0}', space=vmem, size = 0x1000, scoped, tag = 'output window, operand 0, single buffered']
    %6 = vsyncpa [#allocation3], 0
    %7 = vsyncpa [#allocation4], 0
    // Predicated region
    $region2: #{tpu_custom_call.1} parent=1 // pred_check
      _
    $region3: #{tpu_custom_call.1} parent=1 // pred_check_branch
      %9 = sbr.rel (0) target = $region5
    $region4: #{tpu_custom_call.1} parent=1 // pred_region
      %s11 = ssub.s32 128, 128
      %12 = vsyncadd [#allocation3], %s11
      %s14 = sshll.u32 [#allocation2], 4
      %s15 = int_to_ptr.vmem [resolvable:$true] %s14
      %17 = dma.hbm_to_vmem [thread:$0]  %s0, 128, %s15, [#allocation3]
    $region5: #{tpu_custom_call.1} parent=1 // pred_fallthru
      _
    // Predicated region
    $region6: #{tpu_custom_call.1} parent=1 // pred_check
      _
    $region7: #{tpu_custom_call.1} parent=1 // pred_check_branch
      %19 = sbr.rel (0) target = $region9
    $region8: #{tpu_custom_call.1} parent=1 // pred_region
      %20 = dma.done [#allocation3], 128
    $region9: #{tpu_custom_call.1} parent=1 // pred_fallthru
      _
    %v21 = vld [vmem:[#allocation2] sm:$0xff]
    %22 = vrot.lane.b32.xlu0 %v21, 3
    %v23 = vpop.permute.xlu0 %22
    %24 = vst [vmem:[#allocation5] sm:$0xff] %v23
    // Predicated region
    $region10: #{tpu_custom_call.1} parent=1 // pred_check
      _
    $region11: #{tpu_custom_call.1} parent=1 // pred_check_branch
      %26 = sbr.rel (0) target = $region13
    $region12: #{tpu_custom_call.1} parent=1 // pred_region
      %s28 = ssub.s32 128, 128
      %29 = vsyncadd [#allocation4], %s28
      %s31 = sshll.u32 [#allocation5], 4
      %s32 = int_to_ptr.vmem [resolvable:$true] %s31
      %34 = dma.vmem_to_hbm [thread:$0]  %s32, 128, %s1, [#allocation4]
    $region13: #{tpu_custom_call.1} parent=1 // pred_fallthru
      _
    // Predicated region
    $region14: #{tpu_custom_call.1} parent=1 // pred_check
      _
    $region15: #{tpu_custom_call.1} parent=1 // pred_check_branch
      %36 = sbr.rel (0) target = $region17
    $region16: #{tpu_custom_call.1} parent=1 // pred_region
      %37 = dma.done [#allocation4], 128
    $region17: #{tpu_custom_call.1} parent=1 // pred_fallthru
      _
    %38 = vsyncpa [#allocation3], 1
    %39 = vsyncpa [#allocation4], 1

</llo_original>
